<compile_context>
chip_gen: v7x
topology: tpu7x:2x2x1
jax: 0.10.0
libtpu: 0.0.40
codegen_flags: <defaults>
</compile_context>

<pallas_src>
import functools

import jax
import jax.numpy as jnp
from jax.experimental import pallas as pl
from jax.experimental.pallas import tpu as pltpu


MAX_BLOCK_ELEMS = 2048 * 512   # 4 MiB f32 per block buffer (<= 16 MiB VMEM double-buffered)
MIN_BLOCK_ELEMS = 128 * 1024   # 512 KiB f32 block floor for medium inputs
MIN_GRID_STEPS = 8             # >= ~4 steps per TensorCore on v7x (2 TCs)
_LANE_CANDIDATES = (1024, 512, 256, 128)


def _cdiv(a, b):
    return -(-a // b)


def _round_up(a, b):
    return _cdiv(a, b) * b


def _swish_kernel(beta_ref, x_ref, o_ref):
    # beta is an f32 scalar in SMEM; elementwise math on VPU/EUP in f32.
    beta = beta_ref[0]
    x = x_ref[...].astype(jnp.float32)
    # sigmoid(z) = 0.5*(tanh(z/2) + 1): one EUP push per element (vs exp + reciprocal).
    sig = 0.5 * (jnp.tanh((0.5 * beta) * x) + 1.0)
    o_ref[...] = (x * sig).astype(o_ref.dtype)
    # TODO(synk): on v6e/v7x a bf16 input could be computed in bf16 (halves VPU/EUP work);
    # kept f32 here so the same kernel is exact-safe on v5e and matches the f32 reference.


def _choose_lane(total):
    """Largest lane width (multiple of 128) dividing `total`, preferring rows % 8 == 0."""
    fallback = None
    for lane in _LANE_CANDIDATES:
        if total % lane == 0:
            rows = total // lane
            if rows % 8 == 0:
                return lane
            if fallback is None:
                fallback = lane
    return fallback  # always set on this path because total % 128 == 0


def _choose_block_rows(rows, lane):
    """Block rows: <= 4 MiB blocks, >= ~MIN_GRID_STEPS steps for medium/large inputs."""
    if rows <= 8:
        return rows                                   # single full-height block
    min_br = max(8, _round_up(max(1, MIN_BLOCK_ELEMS // lane), 8))
    max_br = max(min_br, (MAX_BLOCK_ELEMS // lane) // 8 * 8)
    target = _round_up(_cdiv(rows, MIN_GRID_STEPS), 8)
    br = min(max_br, max(min_br, target))
    return rows if br >= rows else br


def _swish_2d(x2d, beta, block_rows):
    rows, lanes = x2d.shape
    beta_arr = jnp.asarray(beta, dtype=jnp.float32).reshape((1,))
    grid = (_cdiv(rows, block_rows),)                 # edge block masked automatically
    return pl.pallas_call(
        _swish_kernel,
        out_shape=jax.ShapeDtypeStruct((rows, lanes), x2d.dtype),
        grid_spec=pltpu.PrefetchScalarGridSpec(
            num_scalar_prefetch=0,
            grid=grid,
            in_specs=[
                pl.BlockSpec(memory_space=pltpu.SMEM),                  # beta scalar
                pl.BlockSpec((block_rows, lanes), lambda i: (i, 0)),    # x tile
            ],
            out_specs=pl.BlockSpec((block_rows, lanes), lambda i: (i, 0)),
        ),
        compiler_params=pltpu.CompilerParams(
            dimension_semantics=("parallel",),   # shard the grid across v7x's 2 TCs
            vmem_limit_bytes=32 << 20,           # plenty for <=4 MiB blocks, v7x-safe
        ),
    )(beta_arr, x2d)


@jax.jit
def _swish_jit(x, beta):
    orig_shape = x.shape
    total = x.size

    if total % 128 == 0:
        # Aligned path: free reshape to a lane-dense slab; NO pad, NO output slice.
        lane = _choose_lane(total)
        rows = total // lane
        out2d = _swish_2d(x.reshape(rows, lane), beta, _choose_block_rows(rows, lane))
        return out2d.reshape(orig_shape)

    # Unaligned fallback (total not a multiple of 128): pad the flat tail only.
    x_flat = jnp.ravel(x)
    padded = _round_up(total, 128)
    x_flat = jnp.pad(x_flat, (0, padded - total))     # swish(0) == 0, padding is safe
    lane = _choose_lane(padded)
    rows = padded // lane
    out2d = _swish_2d(x_flat.reshape(rows, lane), beta, _choose_block_rows(rows, lane))
    return out2d.reshape(-1)[:total].reshape(orig_shape)


def swish(x, beta=1.0):
    """Elementwise Swish: x * sigmoid(beta * x). Any shape; same shape/dtype out."""
    return _swish_jit(x, beta)


if __name__ == "__main__":
    key = jax.random.PRNGKey(0)
    x = jax.random.normal(key, (2, 4, 16, 16), dtype=jnp.float32)  # NCHW, as in the module
    beta = 1.0

    out = jax.block_until_ready(swish(x, beta))

    # Reference check against plain JAX.
    ref = x * jax.nn.sigmoid(beta * x)
    assert out.shape == x.shape and out.dtype == x.dtype
    assert jnp.allclose(out, ref, atol=1e-5, rtol=1e-5)

    print("KERNEL_OK")
</pallas_src>

<mosaic_0001>
module attributes {stable_mosaic.version = 11 : i64} {
  func.func @_swish_kernel(%arg0: i32, %arg1: memref<1xf32, #tpu.memory_space<smem>>, %arg2: memref<8x256xf32, #tpu.memory_space<vmem>>, %arg3: memref<8x256xf32, #tpu.memory_space<vmem>>) attributes {dimension_semantics = [#tpu.dimension_semantics<parallel>], iteration_bounds = array<i64: 1>, scalar_prefetch = 0 : i64, scratch_operands = 0 : i64, tpu.core_type = #tpu.core_type<tc>, window_params = [{transform_indices = @transform_0, window_bounds = array<i64: 1>}, {transform_indices = @transform_1, window_bounds = array<i64: 8, 256>}, {transform_indices = @transform_2, window_bounds = array<i64: 8, 256>}]} {
    %c0 = arith.constant 0 : index
    %0 = memref.load %arg1[%c0] : memref<1xf32, #tpu.memory_space<smem>>
    %c0_0 = arith.constant 0 : index
    %c0_1 = arith.constant 0 : index
    %1 = vector.load %arg2[%c0_0, %c0_1] : memref<8x256xf32, #tpu.memory_space<vmem>>, vector<8x256xf32>
    %cst = arith.constant 5.000000e-01 : f32
    %2 = arith.mulf %cst, %0 : f32
    %3 = vector.broadcast %2 : f32 to vector<8x256xf32>
    %4 = arith.mulf %3, %1 : vector<8x256xf32>
    %5 = math.tanh %4 : vector<8x256xf32>
    %cst_2 = arith.constant 1.000000e+00 : f32
    %6 = vector.broadcast %cst_2 : f32 to vector<8x256xf32>
    %7 = arith.addf %5, %6 : vector<8x256xf32>
    %cst_3 = arith.constant 5.000000e-01 : f32
    %8 = vector.broadcast %cst_3 : f32 to vector<8x256xf32>
    %9 = arith.mulf %8, %7 : vector<8x256xf32>
    %10 = arith.mulf %1, %9 : vector<8x256xf32>
    %c0_4 = arith.constant 0 : index
    %c0_5 = arith.constant 0 : index
    %11 = vector.load %arg3[%c0_4, %c0_5] : memref<8x256xf32, #tpu.memory_space<vmem>>, vector<8x256xf32>
    tpu.vector_store %arg3[%c0_4, %c0_5], %10 {strides = array<i32>} : memref<8x256xf32, #tpu.memory_space<vmem>>, vector<8x256xf32>,
    return
  }
  func.func @transform_0(%arg0: i32) -> i32 {
    %c0_i32 = arith.constant 0 : i32
    %c0_i32_0 = arith.constant 0 : i32
    return %c0_i32 : i32
  }
  func.func @transform_1(%arg0: i32) -> (i32, i32) {
    %c0_i32 = arith.constant 0 : i32
    %c0_i32_0 = arith.constant 0 : i32
    return %arg0, %c0_i32 : i32, i32
  }
  func.func @transform_2(%arg0: i32) -> (i32, i32) {
    %c0_i32 = arith.constant 0 : i32
    %c0_i32_0 = arith.constant 0 : i32
    return %arg0, %c0_i32 : i32, i32
  }
}

</mosaic_0001>

<llo_original>
// kernel: _swish_jit.1
$region0: #{_swish_jit.1}
  #allocation0 [shape = 'u32[]', space=smem, size = 0x4, offset = 0x4, fixed_abs, tag = 'smem constant byte address 0x4 - core index']
  #allocation1 [shape = 'u32[144,128]{1,0:T(1,128)}', space=vmem, size = 0x12000, scoped, tag = 'internal scratch']
  #allocation2 [shape = 'f32[1]{0:T(128)S(6)}', space=smem, size = 0x200, scoped, tag = 'scoped memory for _swish_jit.1']
  %s0 = inlined_call_operand.<no memory space> [shape: f32[1], index: 0, kind: input, shape index: {}]
  %s1 = inlined_call_operand.vmem [shape: f32[8,256], index: 1, kind: input, shape index: {}]
  %s2 = inlined_call_operand.vmem [shape: f32[8,256], index: 2, kind: output, shape index: {}]
  %s3 = sld [smem:[#allocation0]]
  $region18: #{_swish_jit.1} parent=0
    _
  %s5 = ssub.s32 1, %s3
  %s6 = scalar_select 0, %s5, %s3
  %7 = sst [smem:[#allocation2]] %s0
  // Predicated region
  $region2: #{_swish_jit.1} parent=0 // pred_check
    _
  $region3: #{_swish_jit.1} parent=0 // pred_check_branch
    %9 = sbr.rel (0) target = $region5
  $region4: #{_swish_jit.1} parent=0 // pred_region
    _
  $region5: #{_swish_jit.1} parent=0 // pred_fallthru
    _
  // Predicated region
  $region6: #{_swish_jit.1} parent=0 // pred_check
    _
  $region7: #{_swish_jit.1} parent=0 // pred_check_branch
    %11 = sbr.rel (0) target = $region9
  $region8: #{_swish_jit.1} parent=0 // pred_region
    _
  $region9: #{_swish_jit.1} parent=0 // pred_fallthru
    _
  %s12 = sld [smem:[#allocation2]]
  %v13 = vld [vmem:[%s1] sm:$0xff]
  %v14 = vld [vmem:[%s1 + $0x8] sm:$0xff]
  %s15 = smul.f32 %s12, 0.5
  %v16 = vstv %s15
  %v17 = vmul.f32 %v16, %v13
  %v18 = vmul.f32 %v16, %v14
  %v19 = vtanh.pop %v17
  %v20 = vtanh.pop %v18
  %v21 = vadd.f32 %v19, 1.0
  %v22 = vadd.f32 %v20, 1.0
  %v23 = vmul.f32 %v21, 0.5
  %v24 = vmul.f32 %v22, 0.5
  %v25 = vmul.f32 %v13, %v23
  %v26 = vmul.f32 %v14, %v24
  %27 = vst [vmem:[%s2] sm:$0xff] %v25
  %28 = vst [vmem:[%s2 + $0x8] sm:$0xff] %v26
  // Predicated region
  $region10: #{_swish_jit.1} parent=0 // pred_check
    _
  $region11: #{_swish_jit.1} parent=0 // pred_check_branch
    %30 = sbr.rel (0) target = $region13
  $region12: #{_swish_jit.1} parent=0 // pred_region
    _
  $region13: #{_swish_jit.1} parent=0 // pred_fallthru
    _
  // Predicated region
  $region14: #{_swish_jit.1} parent=0 // pred_check
    _
  $region15: #{_swish_jit.1} parent=0 // pred_check_branch
    %32 = sbr.rel (0) target = $region17
  $region16: #{_swish_jit.1} parent=0 // pred_region
    _
  $region17: #{_swish_jit.1} parent=0 // pred_fallthru
    _

</llo_original>
